<compile_context>
chip_gen: v6e
topology: v6e:2x2x1
jax: 0.10.0
libtpu: 0.0.40
codegen_flags: <defaults>
</compile_context>

<pallas_src>
import jax
import jax.numpy as jnp
from jax import lax
from jax.experimental import pallas as pl
from jax.experimental.pallas import tpu as pltpu

_LANE = 128
_SUBLANE = 8


# ----------------------------------------------------------------------------
# sizing helpers (generation-aware VMEM / HBM budgets)
# ----------------------------------------------------------------------------
def _round_up(x, m):
    return ((x + m - 1) // m) * m


def _round_down(x, m):
    return (x // m) * m


def _vmem_capacity_bytes():
    try:
        return int(pltpu.get_tpu_info().vmem_capacity_bytes)
    except Exception:
        return 64 << 20  # conservative fallback (v7x physical VMEM)


def _x_double_buffer_budget():
    # Bytes allowed for the double-buffered X tile; ~cap/4 leaves headroom for
    # the output double-buffer, replicated constants and compiler scratch.
    cap = _vmem_capacity_bytes()
    return max(8 << 20, min(cap // 4, 32 << 20))


def _compiler_params(need_bytes):
    cap = _vmem_capacity_bytes()
    limit = int(min(max(need_bytes, 32 << 20), max(cap - (8 << 20), 32 << 20)))
    return pltpu.CompilerParams(
        dimension_semantics=("parallel",), vmem_limit_bytes=limit)


def _mm_lane_tile(N, p):
    """Lane tile for the per-sample kernels."""
    pad_p = _round_up(p, _LANE)
    # HBM: >= ~2 MiB of X traffic per grid step so the ~0.35us/step overhead is
    # amortized (these kernels are memory-bound; this is the main lever).
    tn_hbm = _round_up(max((2 << 20) // (p * 4), 1024), _LANE)
    # VMEM: a (tn, p<128) f32 block occupies tn * 128 * 4 bytes per buffer.
    tn_vmem = max(_LANE,
                  _round_down(_x_double_buffer_budget() // (2 * pad_p * 4), _LANE))
    tn = max(_LANE, min(tn_hbm, tn_vmem))
    return min(tn, _round_up(N, _LANE))


# ----------------------------------------------------------------------------
# Kernel 1 (API parity): Watson log_pdf   (K, N) = logC + kappa * (mu X^T)^2
# ----------------------------------------------------------------------------
def _watson_logpdf_kernel(x_ref, mu_ref, kappa_ref, logc_ref, out_ref):
    # x_ref: (tn, p), mu_ref: (K, p) -> s: (K, tn); no host transpose of X.
    s = lax.dot_general(mu_ref[...], x_ref[...],
                        (((1,), (1,)), ((), ())),
                        preferred_element_type=jnp.float32)
    out_ref[...] = logc_ref[...] + kappa_ref[...] * s * s


def watson_log_pdf(X, mu, kappa, logc):
    N, p = X.shape
    K = mu.shape[0]
    tn = _mm_lane_tile(N, p)
    grid = pl.cdiv(N, tn)
    N_pad = grid * tn
    Xf = X.astype(jnp.float32)
    if N_pad != N:
        Xf = jnp.pad(Xf, ((0, N_pad - N), (0, 0)))

    pad_p = _round_up(p, _LANE)
    pad_k = _round_up(K, _SUBLANE)
    need = (2 * tn * pad_p * 4 + 2 * pad_k * tn * 4
            + 4 * pad_k * pad_p * 4 + (4 << 20))

    out = pl.pallas_call(
        _watson_logpdf_kernel,
        out_shape=jax.ShapeDtypeStruct((K, N_pad), jnp.float32),
        grid=(grid,),
        in_specs=[
            pl.BlockSpec((tn, p), lambda i: (i, 0)),
            pl.BlockSpec((K, p), lambda i: (0, 0)),
            pl.BlockSpec((K, 1), lambda i: (0, 0)),
            pl.BlockSpec((K, 1), lambda i: (0, 0)),
        ],
        out_specs=pl.BlockSpec((K, tn), lambda i: (0, i)),
        compiler_params=_compiler_params(need),
    )(Xf, mu.astype(jnp.float32),
      kappa.reshape(K, 1).astype(jnp.float32),
      logc.reshape(K, 1).astype(jnp.float32))
    return out[:, :N]


# ----------------------------------------------------------------------------
# Kernel 2: fused Watson log_pdf + MM_log_likelihood
#   sw[n] = logsumexp_k(bias_k + kappa_k * (mu_k . x_n)^2),
#   bias_k = logC_k + log_softmax(pi)_k  (pre-folded on host).
#   The scalar log_likelihood = sum(sw) is reduced outside the kernel so the
#   grid axis stays "parallel".
# ----------------------------------------------------------------------------
def _watson_mm_kernel(x_ref, mu_ref, kappa_ref, bias_ref, sw_ref):
    s = lax.dot_general(mu_ref[...], x_ref[...],
                        (((1,), (1,)), ((), ())),
                        preferred_element_type=jnp.float32)           # (K, tn)
    ld = bias_ref[...] + kappa_ref[...] * s * s                        # (K, tn)
    m = jnp.max(ld, axis=0, keepdims=True)                             # (1, tn)
    sw_ref[...] = m + jnp.log(jnp.sum(jnp.exp(ld - m), axis=0, keepdims=True))


def watson_mm_log_likelihood(X, mu, kappa, logc, pi,
                             return_samplewise_likelihood=False):
    N, p = X.shape
    K = mu.shape[0]
    tn = _mm_lane_tile(N, p)
    grid = pl.cdiv(N, tn)
    N_pad = grid * tn
    Xf = X.astype(jnp.float32)
    if N_pad != N:
        Xf = jnp.pad(Xf, ((0, N_pad - N), (0, 0)))

    bias = (logc.astype(jnp.float32)
            + jax.nn.log_softmax(pi.astype(jnp.float32))).reshape(K, 1)

    pad_p = _round_up(p, _LANE)
    pad_k = _round_up(K, _SUBLANE)
    need = (2 * tn * pad_p * 4 + 2 * _SUBLANE * tn * 4
            + 4 * pad_k * pad_p * 4 + (4 << 20))

    sw = pl.pallas_call(
        _watson_mm_kernel,
        out_shape=jax.ShapeDtypeStruct((1, N_pad), jnp.float32),
        grid=(grid,),
        in_specs=[
            pl.BlockSpec((tn, p), lambda i: (i, 0)),
            pl.BlockSpec((K, p), lambda i: (0, 0)),
            pl.BlockSpec((K, 1), lambda i: (0, 0)),
            pl.BlockSpec((K, 1), lambda i: (0, 0)),
        ],
        out_specs=pl.BlockSpec((1, tn), lambda i: (0, i)),
        compiler_params=_compiler_params(need),
    )(Xf, mu.astype(jnp.float32),
      kappa.reshape(K, 1).astype(jnp.float32), bias)

    sw = sw[0, :N]
    ll = jnp.sum(sw)
    if return_samplewise_likelihood:
        return ll, sw
    return ll


# ----------------------------------------------------------------------------
# Kernel 3: fused Watson log_pdf + HMM_log_likelihood_seq (uniform length Ns)
#   Layout: X time-major (Ns, p, S); sequences map to lanes; x_ref[t] is
#   (p, ts) so mu(K,p) @ x(p,ts) is in natural MXU orientation.
#   Scaled-forward recursion: alpha carried in exp space (K, ts) with a per-
#   lane running log scale c (1, ts):
#     log_alpha_t = c_t + log(a_t),  a_t = exp(lp_t - m_t - ls) * (Tt @ a_{t-1})
#   (Tt = softmax(T, dim=1).T, columns sum to 1 so the mass is preserved.)
# ----------------------------------------------------------------------------
def _watson_hmm_kernel(x_ref, mu_ref, kappa_ref, logc_ref, logpi_ref, tt_ref,
                       logt_ref):
    Ns = x_ref.shape[0]
    mu = mu_ref[...]
    kappa = kappa_ref[...]
    logc = logc_ref[...]
    Tt = tt_ref[...]                                     # (K, K)

    def log_pdf_at(t):
        s = jnp.dot(mu, x_ref[t], preferred_element_type=jnp.float32)  # (K, ts)
        return logc + kappa * s * s

    lp0 = log_pdf_at(0) + logpi_ref[...]                 # (K, ts)
    m0 = jnp.max(lp0, axis=0, keepdims=True)             # (1, ts)
    a0 = jnp.exp(lp0 - m0)                               # (K, ts)
    c0 = m0                                              # (1, ts)

    def body(t, carry):
        a, c = carry
        ls = jnp.log(jnp.sum(a, axis=0, keepdims=True))  # (1, ts) log (EUP)
        lp = log_pdf_at(t)                                # (K, ts)
        mt = jnp.max(lp, axis=0, keepdims=True)           # (1, ts)
        z = jnp.dot(Tt, a, preferred_element_type=jnp.float32)        # (K, ts)
        a_new = jnp.exp(lp - mt - ls) * z                  # (K, ts) exp (EUP)
        c_new = c + mt + ls
        return a_new, c_new

    unroll = max(1, min(4, Ns - 1))
    a, c = lax.fori_loop(1, Ns, body, (a0, c0), unroll=unroll)

    logt_ref[...] = c + jnp.log(jnp.sum(a, axis=0, keepdims=True))


def watson_hmm_log_likelihood_seq(X, mu, kappa, logc, pi, T, Ns,
                                  return_samplewise_likelihood=False):
    N, p = X.shape
    K = mu.shape[0]
    Ns = int(Ns) if Ns else N
    assert N % Ns == 0, "N must be divisible by the sequence length Ns"
    S = N // Ns

    pad_p8 = _round_up(p, _SUBLANE)
    # VMEM budget for the double-buffered (Ns, p, ts) X tile (no lane padding
    # in this layout: ts is the 128-lane axis).
    ts_vmem = max(_LANE, _round_down(
        _x_double_buffer_budget() // (2 * Ns * pad_p8 * 4), _LANE))

    S128 = _round_up(S, _LANE)
    if S128 < 2 * _LANE:
        ts, grid, S_pad = S, 1, S            # tiny problem: one full-extent block
    else:
        # keep >= 2 grid steps so v7x shards across both TensorCores and the
        # first DMA is overlapped.
        ts = max(_LANE, min(ts_vmem, _round_down(S128 // 2, _LANE)))
        grid = pl.cdiv(S, ts)
        S_pad = grid * ts

    # Time-major (Ns, p, S): recursion indexes the leading axis, sequences sit
    # on the lane axis, and the per-step matmul needs no operand transpose.
    Xt = X.astype(jnp.float32).reshape(S, Ns, p).transpose(1, 2, 0)
    if S_pad != S:
        Xt = jnp.pad(Xt, ((0, 0), (0, 0), (0, S_pad - S)))

    log_pi = jax.nn.log_softmax(pi.astype(jnp.float32)).reshape(K, 1)  # hoisted
    Tt = jax.nn.softmax(T.astype(jnp.float32), axis=1).T               # (K, K)

    pad_k = _round_up(K, _SUBLANE)
    need = (2 * Ns * pad_p8 * ts * 4 + 2 * _SUBLANE * ts * 4
            + 2 * (pad_k * _round_up(p, _LANE) + 4 * pad_k * _LANE) * 4
            + (8 << 20))

    log_t = pl.pallas_call(
        _watson_hmm_kernel,
        out_shape=jax.ShapeDtypeStruct((1, S_pad), jnp.float32),
        grid=(grid,),
        in_specs=[
            pl.BlockSpec((Ns, p, ts), lambda i: (0, 0, i)),
            pl.BlockSpec((K, p), lambda i: (0, 0)),
            pl.BlockSpec((K, 1), lambda i: (0, 0)),
            pl.BlockSpec((K, 1), lambda i: (0, 0)),
            pl.BlockSpec((K, 1), lambda i: (0, 0)),
            pl.BlockSpec((K, K), lambda i: (0, 0)),
        ],
        out_specs=pl.BlockSpec((1, ts), lambda i: (0, i)),
        compiler_params=_compiler_params(need),
    )(Xt, mu.astype(jnp.float32),
      kappa.reshape(K, 1).astype(jnp.float32),
      logc.reshape(K, 1).astype(jnp.float32), log_pi, Tt)

    log_t = log_t[0, :S]
    ll = jnp.sum(log_t)
    if return_samplewise_likelihood:
        return ll, log_t
    return ll


# ----------------------------------------------------------------------------
# Model wrapper mirroring PCMMtorchBaseModel.forward (Watson distribution)
# ----------------------------------------------------------------------------
class PCMMPallas:
    def __init__(self, K, p, HMM=False, samples_per_sequence=0, params=None):
        self.K, self.p, self.HMM = K, p, HMM
        self.distribution = "Watson"
        self.samples_per_sequence = int(samples_per_sequence)
        self.unpack_params(params)

    def unpack_params(self, params):
        self.mu = jnp.asarray(params["mu"], jnp.float32)
        self.kappa = jnp.asarray(params["kappa"], jnp.float32)
        self.pi = jnp.asarray(
            params.get("pi", jnp.ones(self.K) / self.K), jnp.float32)
        if self.HMM:
            self.T = jnp.asarray(params["T"], jnp.float32)
        # TODO(synk): exact Watson normalizer needs Kummer's M(1/2, p/2, kappa);
        # use a deterministic placeholder log-normalizer instead.
        self.logc = -0.5 * self.kappa - 0.5 * self.p * jnp.log(jnp.pi)

    def log_pdf(self, X, recompute_statics=False):
        return watson_log_pdf(X, self.mu, self.kappa, self.logc)

    def forward(self, X, return_samplewise_likelihood=False, recompute_statics=False):
        # log_pdf is fused into the likelihood kernels (no (K, N) HBM round trip).
        if self.HMM:
            Ns = self.samples_per_sequence if self.samples_per_sequence > 0 else X.shape[0]
            return watson_hmm_log_likelihood_seq(
                X, self.mu, self.kappa, self.logc, self.pi, self.T,
                Ns, return_samplewise_likelihood)
        return watson_mm_log_likelihood(
            X, self.mu, self.kappa, self.logc, self.pi,
            return_samplewise_likelihood)


# ----------------------------------------------------------------------------
# Pure-JAX references (correctness check only)
# ----------------------------------------------------------------------------
def _ref_log_pdf(X, mu, kappa, logc):
    s = X @ mu.T                                        # (N, K)
    return logc[:, None] + kappa[:, None] * (s.T ** 2)  # (K, N)


def _ref_mm(log_pdf, pi):
    log_pi = jax.nn.log_softmax(pi)
    ld = log_pdf + log_pi[:, None]
    lse = jax.scipy.special.logsumexp(ld, axis=0)
    return jnp.sum(lse), lse


def _ref_hmm(log_pdf, pi, T, Ns):
    K, N = log_pdf.shape
    S = N // Ns
    lp_r = log_pdf.T.reshape(S, Ns, K)
    log_T = jax.nn.log_softmax(T, axis=1)
    log_pi = jax.nn.log_softmax(pi)
    log_alpha = lp_r[:, 0, :] + log_pi[None]
    for t in range(1, Ns):
        log_alpha = lp_r[:, t, :] + jax.scipy.special.logsumexp(
            log_alpha[:, :, None] + log_T[None], axis=1)
    log_t = jax.scipy.special.logsumexp(log_alpha, axis=-1)
    return jnp.sum(log_t), log_t


if __name__ == "__main__":
    K, p, N = 8, 32, 256
    Ns = 32                       # uniform sequence length -> 8 sequences

    key = jax.random.PRNGKey(0)
    k1, k2, k3, k4, k5 = jax.random.split(key, 5)
    X = jax.random.normal(k1, (N, p), jnp.float32)
    X = X / jnp.linalg.norm(X, axis=1, keepdims=True)
    mu = jax.random.normal(k2, (K, p), jnp.float32)
    mu = mu / jnp.linalg.norm(mu, axis=1, keepdims=True)
    kappa = jnp.abs(jax.random.normal(k3, (K,), jnp.float32)) * 5.0 + 1.0
    pi = jax.random.normal(k4, (K,), jnp.float32)
    T = jax.random.normal(k5, (K, K), jnp.float32)

    # --- mixture-model (HMM=False) path ---
    mm_model = PCMMPallas(K=K, p=p, HMM=False,
                          params=dict(mu=mu, kappa=kappa, pi=pi))
    ll_mm, sw_mm = mm_model.forward(X, return_samplewise_likelihood=True)
    jax.block_until_ready((ll_mm, sw_mm))

    lp_ref = _ref_log_pdf(X, mu, kappa, mm_model.logc)
    ll_mm_ref, sw_mm_ref = _ref_mm(lp_ref, pi)
    assert sw_mm.shape == (N,)
    assert jnp.allclose(ll_mm, ll_mm_ref, rtol=2e-4, atol=1e-3), (ll_mm, ll_mm_ref)
    assert jnp.allclose(sw_mm, sw_mm_ref, rtol=2e-4, atol=1e-3)

    # MM path with N not a multiple of 128 (exercises cdiv grid + padding)
    X2 = X[:200]
    ll_mm2, sw_mm2 = mm_model.forward(X2, return_samplewise_likelihood=True)
    jax.block_until_ready((ll_mm2, sw_mm2))
    lp2_ref = _ref_log_pdf(X2, mu, kappa, mm_model.logc)
    ll_mm2_ref, sw_mm2_ref = _ref_mm(lp2_ref, pi)
    assert sw_mm2.shape == (200,)
    assert jnp.allclose(ll_mm2, ll_mm2_ref, rtol=2e-4, atol=1e-3)
    assert jnp.allclose(sw_mm2, sw_mm2_ref, rtol=2e-4, atol=1e-3)

    # standalone log_pdf kernel (API parity with the base class)
    lp_pallas = mm_model.log_pdf(X2)
    jax.block_until_ready(lp_pallas)
    assert lp_pallas.shape == (K, 200)
    assert jnp.allclose(lp_pallas, lp2_ref, rtol=2e-4, atol=1e-3)

    # --- HMM path ---
    hmm_model = PCMMPallas(K=K, p=p, HMM=True, samples_per_sequence=Ns,
                           params=dict(mu=mu, kappa=kappa, pi=pi, T=T))
    ll_hmm, logt_hmm = hmm_model.forward(X, return_samplewise_likelihood=True)
    jax.block_until_ready((ll_hmm, logt_hmm))

    ll_hmm_ref, logt_hmm_ref = _ref_hmm(lp_ref, pi, T, Ns)
    assert logt_hmm.shape == (N // Ns,)
    assert jnp.allclose(ll_hmm, ll_hmm_ref, rtol=2e-4, atol=1e-3), (ll_hmm, ll_hmm_ref)
    assert jnp.allclose(logt_hmm, logt_hmm_ref, rtol=2e-4, atol=1e-3)

    print("KERNEL_OK")
</pallas_src>

<mosaic_0001>
module attributes {stable_mosaic.version = 11 : i64} {
  func.func @_watson_mm_kernel(%arg0: i32, %arg1: memref<256x32xf32, #tpu.memory_space<vmem>>, %arg2: memref<8x32xf32, #tpu.memory_space<vmem>>, %arg3: memref<8x1xf32, #tpu.memory_space<vmem>>, %arg4: memref<8x1xf32, #tpu.memory_space<vmem>>, %arg5: memref<1x256xf32, #tpu.memory_space<vmem>>) attributes {dimension_semantics = [#tpu.dimension_semantics<parallel>], iteration_bounds = array<i64: 1>, scalar_prefetch = 0 : i64, scratch_operands = 0 : i64, tpu.core_type = #tpu.core_type<tc>, window_params = [{transform_indices = @transform_0, window_bounds = array<i64: 256, 32>}, {pipeline_mode = #tpu.pipeline_mode<synchronous>, transform_indices = @transform_1, window_bounds = array<i64: 8, 32>}, {pipeline_mode = #tpu.pipeline_mode<synchronous>, transform_indices = @transform_2, window_bounds = array<i64: 8, 1>}, {pipeline_mode = #tpu.pipeline_mode<synchronous>, transform_indices = @transform_3, window_bounds = array<i64: 8, 1>}, {transform_indices = @transform_4, window_bounds = array<i64: 1, 256>}]} {
    %c0 = arith.constant 0 : index
    %c0_0 = arith.constant 0 : index
    %0 = vector.load %arg2[%c0, %c0_0] : memref<8x32xf32, #tpu.memory_space<vmem>>, vector<8x32xf32>
    %c0_1 = arith.constant 0 : index
    %c0_2 = arith.constant 0 : index
    %1 = vector.load %arg1[%c0_1, %c0_2] : memref<256x32xf32, #tpu.memory_space<vmem>>, vector<256x32xf32>
    %cst = arith.constant dense<0.000000e+00> : vector<8x256xf32>
    %2 = tpu.matmul %0, %1, %cst {dimension_numbers = #tpu.dot_dimension_numbers<[1], [1], [0], [0], [0, 0, 1, 0], [], []>} : vector<8x32xf32>, vector<256x32xf32>, vector<8x256xf32> -> vector<8x256xf32>
    %c0_3 = arith.constant 0 : index
    %c0_4 = arith.constant 0 : index
    %3 = vector.load %arg4[%c0_3, %c0_4] : memref<8x1xf32, #tpu.memory_space<vmem>>, vector<8x1xf32>
    %c0_5 = arith.constant 0 : index
    %c0_6 = arith.constant 0 : index
    %4 = vector.load %arg3[%c0_5, %c0_6] : memref<8x1xf32, #tpu.memory_space<vmem>>, vector<8x1xf32>
    %5 = vector.broadcast %4 : vector<8x1xf32> to vector<8x256xf32>
    %6 = arith.mulf %5, %2 : vector<8x256xf32>
    %7 = arith.mulf %6, %2 : vector<8x256xf32>
    %8 = vector.broadcast %3 : vector<8x1xf32> to vector<8x256xf32>
    %9 = arith.addf %8, %7 : vector<8x256xf32>
    %cst_7 = arith.constant dense<0xFF800000> : vector<256xf32>
    %10 = vector.multi_reduction <maximumf>, %9, %cst_7 [0] : vector<8x256xf32> to vector<256xf32>
    %11 = vector.shape_cast %10 : vector<256xf32> to vector<1x256xf32>
    %12 = vector.broadcast %11 : vector<1x256xf32> to vector<8x256xf32>
    %13 = arith.subf %9, %12 : vector<8x256xf32>
    %14 = math.exp %13 : vector<8x256xf32>
    %cst_8 = arith.constant dense<0.000000e+00> : vector<256xf32>
    %15 = vector.multi_reduction <add>, %14, %cst_8 [0] : vector<8x256xf32> to vector<256xf32>
    %16 = vector.shape_cast %15 : vector<256xf32> to vector<1x256xf32>
    %17 = math.log %16 : vector<1x256xf32>
    %18 = arith.addf %11, %17 : vector<1x256xf32>
    %c0_9 = arith.constant 0 : index
    %c0_10 = arith.constant 0 : index
    %19 = vector.load %arg5[%c0_9, %c0_10] : memref<1x256xf32, #tpu.memory_space<vmem>>, vector<1x256xf32>
    tpu.vector_store %arg5[%c0_9, %c0_10], %18 {strides = array<i32>} : memref<1x256xf32, #tpu.memory_space<vmem>>, vector<1x256xf32>,
    return
  }
  func.func @transform_0(%arg0: i32) -> (i32, i32) {
    %c0_i32 = arith.constant 0 : i32
    %c0_i32_0 = arith.constant 0 : i32
    return %arg0, %c0_i32 : i32, i32
  }
  func.func @transform_1(%arg0: i32) -> (i32, i32) {
    %c0_i32 = arith.constant 0 : i32
    %c0_i32_0 = arith.constant 0 : i32
    %c0_i32_1 = arith.constant 0 : i32
    return %c0_i32, %c0_i32_0 : i32, i32
  }
  func.func @transform_2(%arg0: i32) -> (i32, i32) {
    %c0_i32 = arith.constant 0 : i32
    %c0_i32_0 = arith.constant 0 : i32
    %c0_i32_1 = arith.constant 0 : i32
    return %c0_i32, %c0_i32_0 : i32, i32
  }
  func.func @transform_3(%arg0: i32) -> (i32, i32) {
    %c0_i32 = arith.constant 0 : i32
    %c0_i32_0 = arith.constant 0 : i32
    %c0_i32_1 = arith.constant 0 : i32
    return %c0_i32, %c0_i32_0 : i32, i32
  }
  func.func @transform_4(%arg0: i32) -> (i32, i32) {
    %c0_i32 = arith.constant 0 : i32
    %c0_i32_0 = arith.constant 0 : i32
    return %c0_i32, %arg0 : i32, i32
  }
}

</mosaic_0001>

<llo_original>
// kernel: tpu_custom_call.1
$region0: #{tpu_custom_call.1}
  #allocation0 [shape = 'u32[]', space=smem, size = 0x4, offset = 0x4, fixed_abs, tag = 'smem constant byte address 0x4 - core index']
  #allocation1 [shape = 'u32[144,128]{1,0:T(1,128)}', space=vmem, size = 0x12000, scoped, tag = 'internal scratch']
  %s0 = inlined_call_operand.vmem [shape: f32[256,32], index: 0, kind: input, shape index: {}]
  %s1 = inlined_call_operand.vmem [shape: f32[8,32], index: 1, kind: input, shape index: {}]
  %s2 = inlined_call_operand.vmem [shape: f32[8,1], index: 2, kind: input, shape index: {}]
  %s3 = inlined_call_operand.vmem [shape: f32[8,1], index: 3, kind: input, shape index: {}]
  %s4 = inlined_call_operand.hbm [shape: f32[1,256], index: 4, kind: output, shape index: {}]
  %s5 = sld [smem:[#allocation0]]
  $region26: #{tpu_custom_call.1} parent=0
    _
  %s7 = ssub.s32 1, %s5
  %s8 = scalar_select 0, %s7, %s5
  $region1: #{tpu_custom_call.1} parent=0
    #allocation2 [shape = 'u8[1024]{0}', space=vmem, size = 0x400, scoped, tag = 'output window, operand 0, single buffered']
    #allocation3 [shape = 's32[1]{0}', space=sflag, size = 0x4, scoped, tag = 'scoped memory for tpu_custom_call.1']
    %9 = vsyncpa [#allocation3], 0
    // Predicated region
    $region2: #{tpu_custom_call.1} parent=1 // pred_check
      _
    $region3: #{tpu_custom_call.1} parent=1 // pred_check_branch
      %11 = sbr.rel (0) target = $region5
    $region4: #{tpu_custom_call.1} parent=1 // pred_region
      _
    $region5: #{tpu_custom_call.1} parent=1 // pred_fallthru
      _
    // Predicated region
    $region6: #{tpu_custom_call.1} parent=1 // pred_check
      _
    $region7: #{tpu_custom_call.1} parent=1 // pred_check_branch
      %13 = sbr.rel (0) target = $region9
    $region8: #{tpu_custom_call.1} parent=1 // pred_region
      _
    $region9: #{tpu_custom_call.1} parent=1 // pred_fallthru
      _
    // Predicated region
    $region10: #{tpu_custom_call.1} parent=1 // pred_check
      _
    $region11: #{tpu_custom_call.1} parent=1 // pred_check_branch
      %15 = sbr.rel (0) target = $region13
    $region12: #{tpu_custom_call.1} parent=1 // pred_region
      _
    $region13: #{tpu_custom_call.1} parent=1 // pred_fallthru
      _
    // Predicated region
    $region14: #{tpu_custom_call.1} parent=1 // pred_check
      _
    $region15: #{tpu_custom_call.1} parent=1 // pred_check_branch
      %17 = sbr.rel (0) target = $region17
    $region16: #{tpu_custom_call.1} parent=1 // pred_region
      _
    $region17: #{tpu_custom_call.1} parent=1 // pred_fallthru
      _
    %v18 = vld [vmem:[%s1] sm:$0xff]
    %v19 = vld [vmem:[%s0] sm:$0xff]
    %v20 = vld [vmem:[%s0 + $0x8] sm:$0xff]
    %v21 = vld [vmem:[%s0 + $0x10] sm:$0xff]
    %v22 = vld [vmem:[%s0 + $0x18] sm:$0xff]
    %v23 = vld [vmem:[%s0 + $0x20] sm:$0xff]
    %v24 = vld [vmem:[%s0 + $0x28] sm:$0xff]
    %v25 = vld [vmem:[%s0 + $0x30] sm:$0xff]
    %v26 = vld [vmem:[%s0 + $0x38] sm:$0xff]
    %v27 = vld [vmem:[%s0 + $0x40] sm:$0xff]
    %v28 = vld [vmem:[%s0 + $0x48] sm:$0xff]
    %v29 = vld [vmem:[%s0 + $0x50] sm:$0xff]
    %v30 = vld [vmem:[%s0 + $0x58] sm:$0xff]
    %v31 = vld [vmem:[%s0 + $0x60] sm:$0xff]
    %v32 = vld [vmem:[%s0 + $0x68] sm:$0xff]
    %v33 = vld [vmem:[%s0 + $0x70] sm:$0xff]
    %v34 = vld [vmem:[%s0 + $0x78] sm:$0xff]
    %v35 = vld [vmem:[%s0 + $0x80] sm:$0xff]
    %v36 = vld [vmem:[%s0 + $0x88] sm:$0xff]
    %v37 = vld [vmem:[%s0 + $0x90] sm:$0xff]
    %v38 = vld [vmem:[%s0 + $0x98] sm:$0xff]
    %v39 = vld [vmem:[%s0 + $0xa0] sm:$0xff]
    %v40 = vld [vmem:[%s0 + $0xa8] sm:$0xff]
    %v41 = vld [vmem:[%s0 + $0xb0] sm:$0xff]
    %v42 = vld [vmem:[%s0 + $0xb8] sm:$0xff]
    %v43 = vld [vmem:[%s0 + $0xc0] sm:$0xff]
    %v44 = vld [vmem:[%s0 + $0xc8] sm:$0xff]
    %v45 = vld [vmem:[%s0 + $0xd0] sm:$0xff]
    %v46 = vld [vmem:[%s0 + $0xd8] sm:$0xff]
    %v47 = vld [vmem:[%s0 + $0xe0] sm:$0xff]
    %v48 = vld [vmem:[%s0 + $0xe8] sm:$0xff]
    %v49 = vld [vmem:[%s0 + $0xf0] sm:$0xff]
    %v50 = vld [vmem:[%s0 + $0xf8] sm:$0xff]
    %vm51 = vcmask 261120
    %v53 = vsel %vm51, %v18, 0
    %v56 = vsel %vm51, %v19, 0
    %v59 = vsel %vm51, %v20, 0
    %v62 = vsel %vm51, %v21, 0
    %v65 = vsel %vm51, %v22, 0
    %v68 = vsel %vm51, %v23, 0
    %v71 = vsel %vm51, %v24, 0
    %v74 = vsel %vm51, %v25, 0
    %v77 = vsel %vm51, %v26, 0
    %v80 = vsel %vm51, %v27, 0
    %v83 = vsel %vm51, %v28, 0
    %v86 = vsel %vm51, %v29, 0
    %v89 = vsel %vm51, %v30, 0
    %v92 = vsel %vm51, %v31, 0
    %v95 = vsel %vm51, %v32, 0
    %v98 = vsel %vm51, %v33, 0
    %v101 = vsel %vm51, %v34, 0
    %v104 = vsel %vm51, %v35, 0
    %v107 = vsel %vm51, %v36, 0
    %v110 = vsel %vm51, %v37, 0
    %v113 = vsel %vm51, %v38, 0
    %v116 = vsel %vm51, %v39, 0
    %v119 = vsel %vm51, %v40, 0
    %v122 = vsel %vm51, %v41, 0
    %v125 = vsel %vm51, %v42, 0
    %v128 = vsel %vm51, %v43, 0
    %v131 = vsel %vm51, %v44, 0
    %v134 = vsel %vm51, %v45, 0
    %v137 = vsel %vm51, %v46, 0
    %v140 = vsel %vm51, %v47, 0
    %v143 = vsel %vm51, %v48, 0
    %v146 = vsel %vm51, %v49, 0
    %v149 = vsel %vm51, %v50, 0
    %151 = vmatprep.subr.mxu0 0.0
    %152 = vmatpush1.xpose.msra.mxu0 %v101
    %153 = vmatprep.subr.mxu0 0.0
    %154 = vmatpush1.xpose.msra.mxu0 %v98
    %155 = vmatprep.subr.mxu0 0.0
    %156 = vmatpush1.xpose.msra.mxu0 %v95
    %157 = vmatprep.subr.mxu0 0.0
    %158 = vmatpush1.xpose.msra.mxu0 %v92
    %159 = vmatprep.subr.mxu0 0.0
    %160 = vmatpush1.xpose.msra.mxu0 %v89
    %161 = vmatprep.subr.mxu0 0.0
    %162 = vmatpush1.xpose.msra.mxu0 %v86
    %163 = vmatprep.subr.mxu0 0.0
    %164 = vmatpush1.xpose.msra.mxu0 %v83
    %165 = vmatprep.subr.mxu0 0.0
    %166 = vmatpush1.xpose.msra.mxu0 %v80
    %167 = vmatprep.subr.mxu0 0.0
    %168 = vmatpush1.xpose.msra.mxu0 %v77
    %169 = vmatprep.subr.mxu0 0.0
    %170 = vmatpush1.xpose.msra.mxu0 %v74
    %171 = vmatprep.subr.mxu0 0.0
    %172 = vmatpush1.xpose.msra.mxu0 %v71
    %173 = vmatprep.subr.mxu0 0.0
    %174 = vmatpush1.xpose.msra.mxu0 %v68
    %175 = vmatprep.subr.mxu0 0.0
    %176 = vmatpush1.xpose.msra.mxu0 %v65
    %177 = vmatprep.subr.mxu0 0.0
    %178 = vmatpush1.xpose.msra.mxu0 %v62
    %179 = vmatprep.subr.mxu0 0.0
    %180 = vmatpush1.xpose.msra.mxu0 %v59
    %181 = vmatprep.subr.mxu0 0.0
    %182 = vmatpush1.xpose.msra.mxu0 %v56
    %183 = vmatprep.subr.mxu0 0.0
    %184 = vmatpush2.xpose.msra.mxu0 %v149
    %185 = vmatprep.subr.mxu0 0.0
    %186 = vmatpush2.xpose.msra.mxu0 %v146
    %187 = vmatprep.subr.mxu0 0.0
    %188 = vmatpush2.xpose.msra.mxu0 %v143
    %189 = vmatprep.subr.mxu0 0.0
    %190 = vmatpush2.xpose.msra.mxu0 %v140
    %191 = vmatprep.subr.mxu0 0.0
    %192 = vmatpush2.xpose.msra.mxu0 %v137
    %193 = vmatprep.subr.mxu0 0.0
    %194 = vmatpush2.xpose.msra.mxu0 %v134
    %195 = vmatprep.subr.mxu0 0.0
    %196 = vmatpush2.xpose.msra.mxu0 %v131
    %197 = vmatprep.subr.mxu0 0.0
    %198 = vmatpush2.xpose.msra.mxu0 %v128
    %199 = vmatprep.subr.mxu0 0.0
    %200 = vmatpush2.xpose.msra.mxu0 %v125
    %201 = vmatprep.subr.mxu0 0.0
    %202 = vmatpush2.xpose.msra.mxu0 %v122
    %203 = vmatprep.subr.mxu0 0.0
    %204 = vmatpush2.xpose.msra.mxu0 %v119
    %205 = vmatprep.subr.mxu0 0.0
    %206 = vmatpush2.xpose.msra.mxu0 %v116
    %207 = vmatprep.subr.mxu0 0.0
    %208 = vmatpush2.xpose.msra.mxu0 %v113
    %209 = vmatprep.subr.mxu0 0.0
    %210 = vmatpush2.xpose.msra.mxu0 %v110
    %211 = vmatprep.subr.mxu0 0.0
    %212 = vmatpush2.xpose.msra.mxu0 %v107
    %213 = vmatprep.subr.mxu0 0.0
    %214 = vmatpush2.xpose.msra.mxu0 %v104
    %215 = vmatprep.mubr.f32.mxu0 0.0
    %216 = vmatmul.mubr.f32.gmra.mxu0 %v53
    %v217 = vpop.f32.mrf.mxu0
    %v218 = vadd.f32 0.0, %v217
    %v219 = vpop.f32.mrf.mxu0
    %v220 = vadd.f32 0.0, %v219
    %221 = vdwg.mxu0
    %v222 = vld [vmem:[%s3] sm:$0xff]
    %v223 = vld [vmem:[%s2] sm:$0xff]
    %225 = vset.pattern.permute.xlu0 0
    %226 = vperm.xlu0 %225, %v223
    %v227 = vpop.permute.xlu0 %226
    %v229 = vmul.f32 %v227, %v218
    %v230 = vmul.f32 %v227, %v220
    %v231 = vmul.f32 %v229, %v218
    %v232 = vmul.f32 %v230, %v220
    %234 = vset.pattern.permute.xlu0 0
    %235 = vperm.xlu0 %234, %v222
    %v236 = vpop.permute.xlu0 %235
    %v238 = vadd.f32 %v236, %v231
    %v239 = vadd.f32 %v236, %v232
    %v240 = vrot.slane %v238, 4
    %v241 = vmax.f32 %v238, %v240
    %v242 = vrot.slane %v241, 2
    %v243 = vmax.f32 %v241, %v242
    %v244 = vrot.slane %v243, 1
    %v245 = vmax.f32 %v243, %v244
    %v246 = vrot.slane %v239, 4
    %v247 = vmax.f32 %v239, %v246
    %v248 = vrot.slane %v247, 2
    %v249 = vmax.f32 %v247, %v248
    %v250 = vrot.slane %v249, 1
    %v251 = vmax.f32 %v249, %v250
    %v252 = vsub.f32 %v238, %v245
    %v253 = vsub.f32 %v239, %v251
    %v254 = vmul.f32 %v252, 1.442695
    %v255 = vpow.pop %v254
    %v256 = vmul.f32 %v253, 1.442695
    %v257 = vpow.pop %v256
    %v258 = vrot.slane %v255, 4
    %v259 = vadd.f32 %v255, %v258
    %v260 = vrot.slane %v259, 2
    %v261 = vadd.f32 %v259, %v260
    %v262 = vrot.slane %v261, 1
    %v263 = vadd.f32 %v261, %v262
    %v264 = vrot.slane %v257, 4
    %v265 = vadd.f32 %v257, %v264
    %v266 = vrot.slane %v265, 2
    %v267 = vadd.f32 %v265, %v266
    %v268 = vrot.slane %v267, 1
    %v269 = vadd.f32 %v267, %v268
    %v270 = vlog2.pop %v263
    %v271 = vmul.f32 %v270, 0.6931472
    %v272 = vlog2.pop %v269
    %v273 = vmul.f32 %v272, 0.6931472
    %v274 = vadd.f32 %v245, %v271
    %v275 = vadd.f32 %v251, %v273
    %v278 = vcombine.low %v274, %v275
    %v280 = vunpack.c.l.s4 1966171168
    %v281 = vunpack.c.0.s8 %v280
    %v282 = vlaneseq
    %v283 = vshrl.u32 %v282, 7
    %v284 = vsub.s32 %v281, %v283
    %v285 = vrot.slane %v278, %v284
    %v287 = vunpack.c.l.s4 1966171168
    %v288 = vunpack.c.0.s8 %v287
    %v289 = vlaneseq
    %v290 = vshrl.u32 %v289, 7
    %v291 = vsub.s32 %v288, %v290
    %v292 = vrot.slane %v285, %v291
    %v294 = vlaneseq
    %vm295 = vcmp.ge.s32.totalorder %v294, 0
    %vm296 = vcmp.lt.s32.totalorder %v294, 256
    %vm297 = vmand %vm295, %vm296
    %298 = vst.msk [vmem:[#allocation2] sm:$0x3] %vm297, %v292
    // Predicated region
    $region18: #{tpu_custom_call.1} parent=1 // pred_check
      _
    $region19: #{tpu_custom_call.1} parent=1 // pred_check_branch
      %300 = sbr.rel (0) target = $region21
    $region20: #{tpu_custom_call.1} parent=1 // pred_region
      %s302 = ssub.s32 32, 32
      %303 = vsyncadd [#allocation3], %s302
      %s305 = sshll.u32 [#allocation2], 4
      %s306 = int_to_ptr.vmem [resolvable:$true] %s305
      %308 = dma.vmem_to_hbm [thread:$0]  %s306, 32, %s4, [#allocation3]
    $region21: #{tpu_custom_call.1} parent=1 // pred_fallthru
      _
    // Predicated region
    $region22: #{tpu_custom_call.1} parent=1 // pred_check
      _
    $region23: #{tpu_custom_call.1} parent=1 // pred_check_branch
      %310 = sbr.rel (0) target = $region25
    $region24: #{tpu_custom_call.1} parent=1 // pred_region
      %311 = dma.done [#allocation3], 32
    $region25: #{tpu_custom_call.1} parent=1 // pred_fallthru
      _
    %312 = vsyncpa [#allocation3], 1

</llo_original>
